<compile_context>
chip_gen: v7x
topology: tpu7x:2x2x1
jax: 0.10.0
libtpu: 0.0.40
codegen_flags: <defaults>
</compile_context>

<pallas_src>
import functools

import jax
import jax.numpy as jnp
from jax import lax
from jax.experimental import pallas as pl
from jax.experimental.pallas import tpu as pltpu

_SQRT_HALF = 0.7071067811865476    # 1 / sqrt(2)
_GELU_C = 0.7978845608028654       # sqrt(2 / pi)


def _gelu(h, approximate):
    if approximate:
        # tanh approximation -> transcendental runs on the EUP (free bundle slot).
        return 0.5 * h * (1.0 + jnp.tanh(_GELU_C * (h + 0.044715 * h * h * h)))
    # Exact erf-based GELU (PyTorch nn.GELU default).
    return 0.5 * h * (1.0 + lax.erf(h * _SQRT_HALF))


def _mlp_kernel_resident(x_ref, w1_ref, b1_ref, w2_ref, b2_ref, o_ref, *,
                         approximate):
    """One row tile; full weights VMEM-resident (single inner chunk)."""
    h = jnp.dot(x_ref[...], w1_ref[...], preferred_element_type=jnp.float32)
    h = _gelu(h + b1_ref[...].astype(jnp.float32), approximate)
    out = jnp.dot(h.astype(w2_ref.dtype), w2_ref[...],
                  preferred_element_type=jnp.float32)
    o_ref[...] = (out + b2_ref[...].astype(jnp.float32)).astype(o_ref.dtype)


def _mlp_kernel_chunked(x_ref, w1_ref, b1_ref, w2_ref, b2_ref, o_ref, acc_ref,
                        *, approximate, n_chunks):
    """One (row tile, inner chunk) step; weights streamed chunk-by-chunk."""
    j = pl.program_id(1)

    h = jnp.dot(x_ref[...], w1_ref[...], preferred_element_type=jnp.float32)
    h = _gelu(h + b1_ref[...].astype(jnp.float32), approximate)
    partial = jnp.dot(h.astype(w2_ref.dtype), w2_ref[...],
                      preferred_element_type=jnp.float32)

    if n_chunks == 1:
        o_ref[...] = (partial + b2_ref[...].astype(jnp.float32)).astype(o_ref.dtype)
        return

    @pl.when(j == 0)
    def _():
        acc_ref[...] = partial

    @pl.when(jnp.logical_and(j > 0, j < n_chunks - 1))
    def _():
        acc_ref[...] += partial

    @pl.when(j == n_chunks - 1)
    def _():
        # Last chunk: read the accumulator once, add the final partial and the
        # bias, and write the output directly (no extra acc store + reload).
        out = acc_ref[...] + partial + b2_ref[...].astype(jnp.float32)
        o_ref[...] = out.astype(o_ref.dtype)


def _round_up(x, m):
    return ((x + m - 1) // m) * m


def _vmem_capacity_bytes():
    try:
        info = pltpu.get_tpu_info()
        cap = getattr(info, "vmem_capacity_bytes", None)
        if cap:
            return int(cap)
    except Exception:
        pass
    return 64 * 2**20  # conservative fallback (v7x per-core VMEM)


def _weight_spec(shape, index_map, bufs):
    if bufs and bufs != 2:
        try:
            return pl.BlockSpec(shape, index_map, pipeline_mode=pl.Buffered(bufs))
        except (TypeError, AttributeError):
            pass
    return pl.BlockSpec(shape, index_map)


def mlp_forward(x, w1, b1, w2, b2, *, row_tile=512, compute_dtype=None,
                approximate_gelu=False, weights_resident=None,
                inner_chunk=None, interpret=False):
    """Fused MLP forward. x: [B, S, dim]; w1: [dim, inner]; w2: [inner, dim]."""
    orig_dtype = x.dtype
    B, S, dim = x.shape
    inner = w1.shape[1]
    N = B * S
    cdt = jnp.dtype(compute_dtype) if compute_dtype is not None else jnp.dtype(orig_dtype)

    # ---- Pad feature dims to lane-dense multiples of 128 (numerically exact).
    dim_p = _round_up(dim, 128)
    inner_p = _round_up(inner, 128)

    x2d = x.reshape(N, dim).astype(cdt)
    w1c = w1.astype(cdt)
    w2c = w2.astype(cdt)
    b1f = b1.astype(jnp.float32)
    b2f = b2.astype(jnp.float32)
    if dim_p != dim or inner_p != inner:
        x2d = jnp.pad(x2d, ((0, 0), (0, dim_p - dim)))
        w1c = jnp.pad(w1c, ((0, dim_p - dim), (0, inner_p - inner)))
        w2c = jnp.pad(w2c, ((0, inner_p - inner), (0, dim_p - dim)))
        b1f = jnp.pad(b1f, (0, inner_p - inner))
        b2f = jnp.pad(b2f, (0, dim_p - dim))

    # ---- VMEM budget (per-core capacity minus headroom).
    wb = cdt.itemsize
    ob = jnp.dtype(orig_dtype).itemsize
    vmem_cap = _vmem_capacity_bytes()
    budget = max(24 * 2**20, vmem_cap - 12 * 2**20)

    def _resident_bytes(tm_):
        return (2 * tm_ * dim_p * (wb + ob)            # x + out tiles, double-buffered
                + 2 * 2 * dim_p * inner_p * wb         # both weights (conservative 2x)
                + 2 * (inner_p + dim_p) * 4)           # f32 biases

    def _streaming_bytes(tm_, tk_, nbuf):
        return (2 * tm_ * dim_p * (wb + ob)
                + nbuf * 2 * dim_p * tk_ * wb          # w1 + w2 chunks, nbuf-deep
                + 2 * (tk_ + dim_p) * 4
                + tm_ * dim_p * 4)                     # f32 accumulator scratch

    # ---- Row tile: large (amortizes weight traffic / per-step overhead), but
    # keep >= 2 row tiles so the "parallel" axis can split across TensorCores.
    rows8 = _round_up(max(N, 1), 8)
    tm = max(8, min(_round_up(row_tile, 8), rows8))
    if rows8 >= 16 and (rows8 + tm - 1) // tm < 2:
        tm = max(8, _round_up((rows8 + 1) // 2, 8))

    # ---- Weight residency / inner chunking.
    resident = weights_resident
    if inner_chunk is not None:
        resident = False
    if resident is None:
        resident = _resident_bytes(tm) <= budget

    tk = None
    weight_buf = 2
    if resident:
        tk = inner_p
    elif inner_chunk is not None:
        tk = min(_round_up(inner_chunk, 128), inner_p)
        while inner_p % tk != 0:
            tk -= 128
        weight_buf = 3 if _streaming_bytes(tm, tk, 3) <= budget else 2
    else:
        for cand in (1024, 512, 256, 128):
            if cand > inner_p or inner_p % cand != 0:
                continue
            for nbuf in (3, 2):
                if _streaming_bytes(tm, cand, nbuf) <= budget:
                    tk, weight_buf = cand, nbuf
                    break
            if tk is not None:
                break
        if tk is None:
            # Last resort: smallest chunk, shrink the row tile until it fits.
            tk, weight_buf = 128, 2
            while tm > 8 and _streaming_bytes(tm, tk, 2) > budget:
                tm = max(8, ((tm // 2) // 8) * 8)

    # ---- Row padding (after the final tm is known).
    n_pad = _round_up(max(N, 1), tm)
    if n_pad != N:
        x2d = jnp.pad(x2d, ((0, n_pad - N), (0, 0)))

    b1_2d = b1f.reshape(1, inner_p)
    b2_2d = b2f.reshape(1, dim_p)

    footprint = _resident_bytes(tm) if resident else _streaming_bytes(tm, tk, weight_buf)
    vmem_limit = int(min(vmem_cap - 8 * 2**20, max(2 * footprint, 32 * 2**20)))
    vmem_limit = max(vmem_limit, footprint + 2 * 2**20)
    vmem_limit = int(min(vmem_limit, vmem_cap - 4 * 2**20))

    n_row_tiles = n_pad // tm

    # ---- Grid / specs.
    if resident:
        kernel = functools.partial(_mlp_kernel_resident, approximate=approximate_gelu)
        grid = (n_row_tiles,)
        in_specs = [
            pl.BlockSpec((tm, dim_p), lambda i: (i, 0)),          # x rows
            pl.BlockSpec((dim_p, inner_p), lambda i: (0, 0)),     # w1 (resident)
            pl.BlockSpec((1, inner_p), lambda i: (0, 0)),         # b1 (resident)
            pl.BlockSpec((inner_p, dim_p), lambda i: (0, 0)),     # w2 (resident)
            pl.BlockSpec((1, dim_p), lambda i: (0, 0)),           # b2 (resident)
        ]
        out_specs = pl.BlockSpec((tm, dim_p), lambda i: (i, 0))
        scratch_shapes = []
        dim_sem = ("parallel",)
        weight_reads = 1
    else:
        n_chunks = inner_p // tk
        kernel = functools.partial(_mlp_kernel_chunked,
                                   approximate=approximate_gelu, n_chunks=n_chunks)
        grid = (n_row_tiles, n_chunks)
        in_specs = [
            pl.BlockSpec((tm, dim_p), lambda i, j: (i, 0)),                 # x rows
            _weight_spec((dim_p, tk), lambda i, j: (0, j), weight_buf),     # w1 cols
            pl.BlockSpec((1, tk), lambda i, j: (0, j)),                     # b1 chunk
            _weight_spec((tk, dim_p), lambda i, j: (j, 0), weight_buf),     # w2 rows
            pl.BlockSpec((1, dim_p), lambda i, j: (0, 0)),                  # b2
        ]
        out_specs = pl.BlockSpec((tm, dim_p), lambda i, j: (i, 0))
        scratch_shapes = [pltpu.VMEM((tm, dim_p), jnp.float32)]
        dim_sem = ("parallel", "arbitrary")
        weight_reads = n_row_tiles

    cost = pl.CostEstimate(
        flops=int(4 * n_pad * dim_p * inner_p),
        transcendentals=int(n_pad * inner_p),
        bytes_accessed=int(n_pad * dim_p * (wb + ob)
                           + weight_reads * 2 * dim_p * inner_p * wb
                           + (inner_p + dim_p) * 4),
    )

    out2d = pl.pallas_call(
        kernel,
        out_shape=jax.ShapeDtypeStruct((n_pad, dim_p), orig_dtype),
        grid_spec=pltpu.PrefetchScalarGridSpec(
            num_scalar_prefetch=0,
            grid=grid,
            in_specs=in_specs,
            out_specs=out_specs,
            scratch_shapes=scratch_shapes,
        ),
        compiler_params=pltpu.CompilerParams(
            dimension_semantics=dim_sem,
            vmem_limit_bytes=vmem_limit,
        ),
        cost_estimate=cost,
        interpret=interpret,
    )(x2d, w1c, b1_2d, w2c, b2_2d)

    out2d = out2d[:N, :dim]
    return out2d.reshape(B, S, dim)


def init_params(key, dim, inner_dim, dtype=jnp.float32):
    """Deterministic synthetic params (PyTorch Linear shapes, stored as [in, out])."""
    k1, k2, k3, k4 = jax.random.split(key, 4)
    w1 = jax.random.uniform(k1, (dim, inner_dim), dtype, -1.0, 1.0) / jnp.sqrt(dim)
    b1 = jax.random.uniform(k2, (inner_dim,), dtype, -1.0, 1.0) / jnp.sqrt(dim)
    w2 = jax.random.uniform(k3, (inner_dim, dim), dtype, -1.0, 1.0) / jnp.sqrt(inner_dim)
    b2 = jax.random.uniform(k4, (dim,), dtype, -1.0, 1.0) / jnp.sqrt(inner_dim)
    return w1, b1, w2, b2


def mlp_reference(x, w1, b1, w2, b2):
    """Pure-JAX reference (exact erf GELU, matches PyTorch nn.GELU default)."""
    h = x @ w1 + b1
    h = 0.5 * h * (1.0 + lax.erf(h * _SQRT_HALF))
    return h @ w2 + b2


if __name__ == "__main__":
    key = jax.random.PRNGKey(0)

    # Main shapes: lane-dense 128-aligned feature dims.
    B, S, dim, inner_dim = 2, 64, 128, 256
    kx, kp = jax.random.split(key)
    x = jax.random.normal(kx, (B, S, dim), jnp.float32)
    w1, b1, w2, b2 = init_params(kp, dim, inner_dim)
    ref = mlp_reference(x, w1, b1, w2, b2)

    # 1) Default path: f32, exact erf GELU, VMEM-resident weights.
    out = jax.block_until_ready(mlp_forward(x, w1, b1, w2, b2))
    assert out.shape == (B, S, dim)
    assert jnp.allclose(out, ref, atol=1e-4, rtol=1e-4), "mismatch (resident, f32)"

    # 2) Streamed-weight / inner-chunked path (exercises the accumulator + Buffered(3)).
    out_c = jax.block_until_ready(
        mlp_forward(x, w1, b1, w2, b2, weights_resident=False, inner_chunk=128))
    assert jnp.allclose(out_c, ref, atol=1e-4, rtol=1e-4), "mismatch (chunked, f32)"

    # 3) bf16 compute path (native MXU rate) + tanh-approx GELU (EUP); f32 accumulation.
    out_bf = jax.block_until_ready(
        mlp_forward(x, w1, b1, w2, b2, compute_dtype=jnp.bfloat16,
                    approximate_gelu=True))
    assert jnp.allclose(out_bf, ref, atol=7.5e-2, rtol=7.5e-2), "mismatch (bf16)"

    # 4) Odd shapes: exercises row padding and 128-padding of feature dims.
    B2, S2, dim2, inner2 = 2, 5, 32, 48
    kx2, kp2 = jax.random.split(jax.random.PRNGKey(1))
    x2 = jax.random.normal(kx2, (B2, S2, dim2), jnp.float32)
    p2 = init_params(kp2, dim2, inner2)
    out2 = jax.block_until_ready(mlp_forward(x2, *p2))
    ref2 = mlp_reference(x2, *p2)
    assert out2.shape == (B2, S2, dim2)
    assert jnp.allclose(out2, ref2, atol=1e-4, rtol=1e-4), "mismatch (odd shapes)"

    print("KERNEL_OK")
</pallas_src>

<mosaic_0001>
module attributes {stable_mosaic.version = 11 : i64} {
  func.func @_mlp_kernel_resident(%arg0: i32, %arg1: memref<64x128xf32, #tpu.memory_space<vmem>>, %arg2: memref<128x256xf32, #tpu.memory_space<vmem>>, %arg3: memref<1x256xf32, #tpu.memory_space<vmem>>, %arg4: memref<256x128xf32, #tpu.memory_space<vmem>>, %arg5: memref<1x128xf32, #tpu.memory_space<vmem>>, %arg6: memref<64x128xf32, #tpu.memory_space<vmem>>) attributes {dimension_semantics = [#tpu.dimension_semantics<parallel>], iteration_bounds = array<i64: 2>, scalar_prefetch = 0 : i64, scratch_operands = 0 : i64, tpu.core_type = #tpu.core_type<tc>, window_params = [{transform_indices = @transform_0, window_bounds = array<i64: 64, 128>}, {pipeline_mode = #tpu.pipeline_mode<synchronous>, transform_indices = @transform_1, window_bounds = array<i64: 128, 256>}, {pipeline_mode = #tpu.pipeline_mode<synchronous>, transform_indices = @transform_2, window_bounds = array<i64: 1, 256>}, {pipeline_mode = #tpu.pipeline_mode<synchronous>, transform_indices = @transform_3, window_bounds = array<i64: 256, 128>}, {pipeline_mode = #tpu.pipeline_mode<synchronous>, transform_indices = @transform_4, window_bounds = array<i64: 1, 128>}, {transform_indices = @transform_5, window_bounds = array<i64: 64, 128>}]} {
    %c0 = arith.constant 0 : index
    %c0_0 = arith.constant 0 : index
    %0 = vector.load %arg1[%c0, %c0_0] : memref<64x128xf32, #tpu.memory_space<vmem>>, vector<64x128xf32>
    %c0_1 = arith.constant 0 : index
    %c0_2 = arith.constant 0 : index
    %1 = vector.load %arg2[%c0_1, %c0_2] : memref<128x256xf32, #tpu.memory_space<vmem>>, vector<128x256xf32>
    %cst = arith.constant dense<0.000000e+00> : vector<64x256xf32>
    %2 = tpu.matmul %0, %1, %cst {dimension_numbers = #tpu.dot_dimension_numbers<[1], [0], [0], [1], [0, 0, 1, 1], [], []>} : vector<64x128xf32>, vector<128x256xf32>, vector<64x256xf32> -> vector<64x256xf32>
    %c0_3 = arith.constant 0 : index
    %c0_4 = arith.constant 0 : index
    %3 = vector.load %arg3[%c0_3, %c0_4] : memref<1x256xf32, #tpu.memory_space<vmem>>, vector<1x256xf32>
    %4 = vector.broadcast %3 : vector<1x256xf32> to vector<64x256xf32>
    %5 = arith.addf %2, %4 : vector<64x256xf32>
    %cst_5 = arith.constant 5.000000e-01 : f32
    %6 = vector.broadcast %cst_5 : f32 to vector<64x256xf32>
    %7 = arith.mulf %6, %5 : vector<64x256xf32>
    %cst_6 = arith.constant 0.707106769 : f32
    %8 = vector.broadcast %cst_6 : f32 to vector<64x256xf32>
    %9 = arith.mulf %5, %8 : vector<64x256xf32>
    %10 = math.erf %9 : vector<64x256xf32>
    %cst_7 = arith.constant 1.000000e+00 : f32
    %11 = vector.broadcast %cst_7 : f32 to vector<64x256xf32>
    %12 = arith.addf %11, %10 : vector<64x256xf32>
    %13 = arith.mulf %7, %12 : vector<64x256xf32>
    %c0_8 = arith.constant 0 : index
    %c0_9 = arith.constant 0 : index
    %14 = vector.load %arg4[%c0_8, %c0_9] : memref<256x128xf32, #tpu.memory_space<vmem>>, vector<256x128xf32>
    %cst_10 = arith.constant dense<0.000000e+00> : vector<64x128xf32>
    %15 = tpu.matmul %13, %14, %cst_10 {dimension_numbers = #tpu.dot_dimension_numbers<[1], [0], [0], [1], [0, 0, 1, 1], [], []>} : vector<64x256xf32>, vector<256x128xf32>, vector<64x128xf32> -> vector<64x128xf32>
    %c0_11 = arith.constant 0 : index
    %c0_12 = arith.constant 0 : index
    %16 = vector.load %arg5[%c0_11, %c0_12] : memref<1x128xf32, #tpu.memory_space<vmem>>, vector<1x128xf32>
    %17 = vector.broadcast %16 : vector<1x128xf32> to vector<64x128xf32>
    %18 = arith.addf %15, %17 : vector<64x128xf32>
    %c0_13 = arith.constant 0 : index
    %c0_14 = arith.constant 0 : index
    %19 = vector.load %arg6[%c0_13, %c0_14] : memref<64x128xf32, #tpu.memory_space<vmem>>, vector<64x128xf32>
    tpu.vector_store %arg6[%c0_13, %c0_14], %18 {strides = array<i32>} : memref<64x128xf32, #tpu.memory_space<vmem>>, vector<64x128xf32>,
    return
  }
  func.func @transform_0(%arg0: i32) -> (i32, i32) {
    %c0_i32 = arith.constant 0 : i32
    %c0_i32_0 = arith.constant 0 : i32
    return %arg0, %c0_i32 : i32, i32
  }
  func.func @transform_1(%arg0: i32) -> (i32, i32) {
    %c0_i32 = arith.constant 0 : i32
    %c0_i32_0 = arith.constant 0 : i32
    %c0_i32_1 = arith.constant 0 : i32
    return %c0_i32, %c0_i32_0 : i32, i32
  }
  func.func @transform_2(%arg0: i32) -> (i32, i32) {
    %c0_i32 = arith.constant 0 : i32
    %c0_i32_0 = arith.constant 0 : i32
    %c0_i32_1 = arith.constant 0 : i32
    return %c0_i32, %c0_i32_0 : i32, i32
  }
  func.func @transform_3(%arg0: i32) -> (i32, i32) {
    %c0_i32 = arith.constant 0 : i32
    %c0_i32_0 = arith.constant 0 : i32
    %c0_i32_1 = arith.constant 0 : i32
    return %c0_i32, %c0_i32_0 : i32, i32
  }
  func.func @transform_4(%arg0: i32) -> (i32, i32) {
    %c0_i32 = arith.constant 0 : i32
    %c0_i32_0 = arith.constant 0 : i32
    %c0_i32_1 = arith.constant 0 : i32
    return %c0_i32, %c0_i32_0 : i32, i32
  }
  func.func @transform_5(%arg0: i32) -> (i32, i32) {
    %c0_i32 = arith.constant 0 : i32
    %c0_i32_0 = arith.constant 0 : i32
    return %arg0, %c0_i32 : i32, i32
  }
}

</mosaic_0001>

<llo_original>
// kernel: tpu_custom_call.1
$region0: #{tpu_custom_call.1}
  #allocation0 [shape = 'u32[]', space=smem, size = 0x4, offset = 0x4, fixed_abs, tag = 'smem constant byte address 0x4 - core index']
  #allocation1 [shape = 'u32[144,128]{1,0:T(1,128)}', space=vmem, size = 0x12000, scoped, tag = 'internal scratch']
  %s0 = inlined_call_operand.hbm [shape: f32[128,128], index: 0, kind: input, shape index: {}]
  %s1 = inlined_call_operand.hbm [shape: f32[128,256], index: 1, kind: input, shape index: {}]
  %s2 = inlined_call_operand.vmem [shape: f32[1,256], index: 2, kind: input, shape index: {}]
  %s3 = inlined_call_operand.hbm [shape: f32[256,128], index: 3, kind: input, shape index: {}]
  %s4 = inlined_call_operand.vmem [shape: f32[1,128], index: 4, kind: input, shape index: {}]
  %s5 = inlined_call_operand.hbm [shape: f32[128,128], index: 5, kind: output, shape index: {}]
  %s6 = sld [smem:[#allocation0]]
  $region65: #{tpu_custom_call.1} parent=0
    _
  %s8 = ssub.s32 1, %s6
  %s9 = scalar_select 0, %s8, %s6
  $region1: #{tpu_custom_call.1} parent=0
    #allocation2 [shape = 'u8[65536]{0}', space=vmem, size = 0x10000, scoped, tag = 'input window, operand 0']
    #allocation3 [shape = 's32[2]{0}', space=sflag, size = 0x8, scoped, tag = 'scoped memory for tpu_custom_call.1']
    #allocation4 [shape = 's32[2]{0}', space=sflag, size = 0x8, scoped, tag = 'scoped memory for tpu_custom_call.1']
    #allocation5 [shape = 'u8[131072]{0}', space=vmem, size = 0x20000, scoped, tag = 'input window, operand 1, single buffered']
    #allocation6 [shape = 's32[1]{0}', space=sflag, size = 0x4, scoped, tag = 'scoped memory for tpu_custom_call.1']
    #allocation7 [shape = 'u8[131072]{0}', space=vmem, size = 0x20000, scoped, tag = 'input window, operand 3, single buffered']
    #allocation8 [shape = 'u8[65536]{0}', space=vmem, size = 0x10000, scoped, tag = 'output window, operand 0']
    %10 = vsyncpa [#allocation3], 0
    %s11 = scalar_lea.sflag [#allocation3], 1
    %12 = vsyncpa %s11, 0
    %13 = vsyncpa [#allocation6], 0
    %14 = vsyncpa [#allocation4], 0
    %s15 = scalar_lea.sflag [#allocation4], 1
    %16 = vsyncpa %s15, 0
    loop: start=0, step=1, limit=4
    $region2: #{tpu_custom_call.1} parent=1 // loop_pre_header
      _
    $region3: #{tpu_custom_call.1} parent=1 // loop_header
      %s18 = sphi 0, %s22
      %p19 = scmp.ge.s32.totalorder %s18, 4
      %s28 = sphi 0, %s30
      %s31 = sphi 0, %s28
      %s32 = sphi 0, %s31
      %s48 = sphi 0, %s32
      %s52 = sphi 0, %s52
      %s54 = sphi 0, %s52
      %s55 = sphi 0, %s54
      %s69 = sphi 0, %s55
      %s73 = sphi 0, %s73
      %s75 = sphi 0, %s73
      %s76 = sphi 0, %s75
      %s90 = sphi 0, %s76
      %s94 = sphi 0, %s94
      %s96 = sphi 0, %s94
      %s97 = sphi 0, %s96
      %s111 = sphi 0, %s97
      %s115 = sphi 0, %s115
      %s117 = sphi 0, %s115
      %s118 = sphi 0, %s117
      %s132 = sphi 0, %s118
      %s138 = sphi 0, %s140
      %s141 = sphi 0, %s138
      %s142 = sphi 0, %s141
      %s158 = sphi 0, %s142
    $region4: #{tpu_custom_call.1} parent=1 // loop_header_branch
      %21 = sbr.rel (%p19) target = $region8
    $region5: #{tpu_custom_call.1} parent=1 // loop_body
      %s23 = ssub.s32 %s18, 1
      %s24 = ssub.s32 %s18, 2
      %s25 = sadd.s32 %s18, 1
      %s26 = ssub.s32 %s18, %s25
      %p27 = scmp.eq.s32.totalorder %s26, 0
      %s29 = sadd.s32 %s28, 1
      %s30 = scalar_select %p27, %s28, %s29
      %p33 = pneg %p27
      %p34 = scmp.eq.s32.totalorder %s18, 1
      %p35 = por %p33, %p34
      %p36 = scmp.ne.s32.totalorder %s28, %s31
      %p37 = scmp.eq.s32.totalorder %s18, 0
      %p38 = por %p36, %p37
      %p39 = scmp.ne.s32.totalorder %s28, %s31
      %p40 = scmp.eq.s32.totalorder %s23, 1
      %p41 = por %p39, %p40
      %p42 = scmp.ne.s32.totalorder %s31, %s32
      %p43 = scmp.eq.s32.totalorder %s23, 0
      %p44 = por %p42, %p43
      %p45 = scmp.ne.s32.totalorder %s31, %s32
      %p46 = scmp.eq.s32.totalorder %s24, 1
      %p47 = por %p45, %p46
      %p49 = scmp.ne.s32.totalorder %s32, %s48
      %p50 = scmp.eq.s32.totalorder %s24, 0
      %p51 = por %p49, %p50
      %s53 = sadd.s32 %s52, 1
      %p56 = scmp.eq.s32.totalorder %s18, 1
      %p57 = scmp.ne.s32.totalorder %s52, %s54
      %p58 = scmp.eq.s32.totalorder %s18, 0
      %p59 = por %p57, %p58
      %p60 = scmp.ne.s32.totalorder %s52, %s54
      %p61 = scmp.eq.s32.totalorder %s23, 1
      %p62 = por %p60, %p61
      %p63 = scmp.ne.s32.totalorder %s54, %s55
      %p64 = scmp.eq.s32.totalorder %s23, 0
      %p65 = por %p63, %p64
      %p66 = scmp.ne.s32.totalorder %s54, %s55
      %p67 = scmp.eq.s32.totalorder %s24, 1
      %p68 = por %p66, %p67
      %p70 = scmp.ne.s32.totalorder %s55, %s69
      %p71 = scmp.eq.s32.totalorder %s24, 0
      %p72 = por %p70, %p71
      %s74 = sadd.s32 %s73, 1
      %p77 = scmp.eq.s32.totalorder %s18, 1
      %p78 = scmp.ne.s32.totalorder %s73, %s75
      %p79 = scmp.eq.s32.totalorder %s18, 0
      %p80 = por %p78, %p79
      %p81 = scmp.ne.s32.totalorder %s73, %s75
      %p82 = scmp.eq.s32.totalorder %s23, 1
      %p83 = por %p81, %p82
      %p84 = scmp.ne.s32.totalorder %s75, %s76
      %p85 = scmp.eq.s32.totalorder %s23, 0
      %p86 = por %p84, %p85
      %p87 = scmp.ne.s32.totalorder %s75, %s76
      %p88 = scmp.eq.s32.totalorder %s24, 1
      %p89 = por %p87, %p88
      %p91 = scmp.ne.s32.totalorder %s76, %s90
      %p92 = scmp.eq.s32.totalorder %s24, 0
      %p93 = por %p91, %p92
      %s95 = sadd.s32 %s94, 1
      %p98 = scmp.eq.s32.totalorder %s18, 1
      %p99 = scmp.ne.s32.totalorder %s94, %s96
      %p100 = scmp.eq.s32.totalorder %s18, 0
      %p101 = por %p99, %p100
      %p102 = scmp.ne.s32.totalorder %s94, %s96
      %p103 = scmp.eq.s32.totalorder %s23, 1
      %p104 = por %p102, %p103
      %p105 = scmp.ne.s32.totalorder %s96, %s97
      %p106 = scmp.eq.s32.totalorder %s23, 0
      %p107 = por %p105, %p106
      %p108 = scmp.ne.s32.totalorder %s96, %s97
      %p109 = scmp.eq.s32.totalorder %s24, 1
      %p110 = por %p108, %p109
      %p112 = scmp.ne.s32.totalorder %s97, %s111
      %p113 = scmp.eq.s32.totalorder %s24, 0
      %p114 = por %p112, %p113
      %s116 = sadd.s32 %s115, 1
      %p119 = scmp.eq.s32.totalorder %s18, 1
      %p120 = scmp.ne.s32.totalorder %s115, %s117
      %p121 = scmp.eq.s32.totalorder %s18, 0
      %p122 = por %p120, %p121
      %p123 = scmp.ne.s32.totalorder %s115, %s117
      %p124 = scmp.eq.s32.totalorder %s23, 1
      %p125 = por %p123, %p124
      %p126 = scmp.ne.s32.totalorder %s117, %s118
      %p127 = scmp.eq.s32.totalorder %s23, 0
      %p128 = por %p126, %p127
      %p129 = scmp.ne.s32.totalorder %s117, %s118
      %p130 = scmp.eq.s32.totalorder %s24, 1
      %p131 = por %p129, %p130
      %p133 = scmp.ne.s32.totalorder %s118, %s132
      %p134 = scmp.eq.s32.totalorder %s24, 0
      %p135 = por %p133, %p134
      %s136 = ssub.s32 %s18, %s25
      %p137 = scmp.eq.s32.totalorder %s136, 0
      %s139 = sadd.s32 %s138, 1
      %s140 = scalar_select %p137, %s138, %s139
      %p143 = pneg %p137
      %p144 = scmp.eq.s32.totalorder %s18, 1
      %p145 = por %p143, %p144
      %p146 = scmp.ne.s32.totalorder %s138, %s141
      %p147 = scmp.eq.s32.totalorder %s18, 0
      %p148 = por %p146, %p147
      %p149 = scmp.ne.s32.totalorder %s138, %s141
      %p150 = scmp.eq.s32.totalorder %s23, 1
      %p151 = por %p149, %p150
      %p152 = scmp.ne.s32.totalorder %s141, %s142
      %p153 = scmp.eq.s32.totalorder %s23, 0
      %p154 = por %p152, %p153
      %p155 = scmp.ne.s32.totalorder %s141, %s142
      %p156 = scmp.eq.s32.totalorder %s24, 1
      %p157 = por %p155, %p156
      %p159 = scmp.ne.s32.totalorder %s142, %s158
      %p160 = scmp.eq.s32.totalorder %s24, 0
      %p161 = por %p159, %p160
      %p162 = scmp.le.s32.totalorder 1, %s18
      %p163 = scmp.lt.s32.totalorder %s18, 3
      %p164 = pnand %p162, %p163
      %p165 = pneg %p164
      // Predicated region
      $region9: #{tpu_custom_call.1} parent=5 // pred_check
        _
      $region10: #{tpu_custom_call.1} parent=5 // pred_check_branch
        %167 = sbr.rel (%p164) target = $region12
      $region11: #{tpu_custom_call.1} parent=5 // pred_region
        %s168 = ssub.s32 %s18, 1
        // Predicated region
        $region13: #{tpu_custom_call.1} parent=11 // pred_check
          %p169 = pneg %p65
        $region14: #{tpu_custom_call.1} parent=11 // pred_check_branch
          %171 = sbr.rel (%p169) target = $region16
        $region15: #{tpu_custom_call.1} parent=11 // pred_region
          %s173 = ssub.s32 4096, 4096
          %174 = vsyncadd [#allocation6], %s173
          %s175 = sshll.u32 [#allocation5], 4
          %s176 = int_to_ptr.vmem [resolvable:$true] %s175
          %181 = dma.hbm_to_vmem [thread:$0]  %s1, 4096, %s176, [#allocation6], 256, 256, 16
        $region16: #{tpu_custom_call.1} parent=11 // pred_fallthru
          _
        // Predicated region
        $region17: #{tpu_custom_call.1} parent=11 // pred_check
          %p182 = pneg %p86
        $region18: #{tpu_custom_call.1} parent=11 // pred_check_branch
          %184 = sbr.rel (%p182) target = $region20
        $region19: #{tpu_custom_call.1} parent=11 // pred_region
          _
        $region20: #{tpu_custom_call.1} parent=11 // pred_fallthru
          _
        // Predicated region
        $region21: #{tpu_custom_call.1} parent=11 // pred_check
          %p185 = pneg %p107
        $region22: #{tpu_custom_call.1} parent=11 // pred_check_branch
          %187 = sbr.rel (%p185) target = $region24
        $region23: #{tpu_custom_call.1} parent=11 // pred_region
          %s189 = ssub.s32 4096, 4096
          %190 = vsyncadd [#allocation6], %s189
          %s191 = sshll.u32 [#allocation7], 4
          %s192 = int_to_ptr.vmem [resolvable:$true] %s191
          %197 = dma.hbm_to_vmem [thread:$0]  %s3, 4096, %s192, [#allocation6], 128, 128, 8
        $region24: #{tpu_custom_call.1} parent=11 // pred_fallthru
          _
        // Predicated region
        $region25: #{tpu_custom_call.1} parent=11 // pred_check
          %p198 = pneg %p128
        $region26: #{tpu_custom_call.1} parent=11 // pred_check_branch
          %200 = sbr.rel (%p198) target = $region28
        $region27: #{tpu_custom_call.1} parent=11 // pred_region
          _
        $region28: #{tpu_custom_call.1} parent=11 // pred_fallthru
          _
      $region12: #{tpu_custom_call.1} parent=5 // pred_fallthru
        _
      %p201 = scmp.lt.s32.totalorder %s18, 2
      // Predicated region
      $region29: #{tpu_custom_call.1} parent=5 // pred_check
        %p202 = pneg %p201
      $region30: #{tpu_custom_call.1} parent=5 // pred_check_branch
        %204 = sbr.rel (%p202) target = $region32
      $region31: #{tpu_custom_call.1} parent=5 // pred_region
        // Predicated region
        $region33: #{tpu_custom_call.1} parent=31 // pred_check
          %p205 = pneg %p38
        $region34: #{tpu_custom_call.1} parent=31 // pred_check_branch
          %207 = sbr.rel (%p205) target = $region36
        $region35: #{tpu_custom_call.1} parent=31 // pred_region
          %s208 = sand.u32 %s28, 1
          %s209 = scalar_lea.sflag [#allocation3], %s208
          %s210 = sand.u32 %s28, 1
          %s211 = smul.addr %s210, 64
          %s212 = scalar_lea.vmem [#allocation2], %s211
          %s213 = smul.u32 8, %s18
          %s215 = ssub.s32 1024, 1024
          %216 = vsyncadd %s209, %s215
          %s217 = smul.addr %s213, 128
          %s218 = scalar_lea.hbm %s0, %s217
          %s219 = sshll.u32 %s212, 4
          %s220 = int_to_ptr.vmem [resolvable:$true] %s219
          %225 = dma.hbm_to_vmem [thread:$0]  %s218, 1024, %s220, %s209, 128, 128, 8
        $region36: #{tpu_custom_call.1} parent=31 // pred_fallthru
          _
      $region32: #{tpu_custom_call.1} parent=5 // pred_fallthru
        _
      %p226 = scmp.le.s32.totalorder 1, %s18
      %p227 = scmp.lt.s32.totalorder %s18, 3
      %p228 = pnand %p226, %p227
      %p229 = pneg %p228
      // Predicated region
      $region37: #{tpu_custom_call.1} parent=5 // pred_check
        _
      $region38: #{tpu_custom_call.1} parent=5 // pred_check_branch
        %231 = sbr.rel (%p228) target = $region40
      $region39: #{tpu_custom_call.1} parent=5 // pred_region
        %s232 = ssub.s32 %s18, 1
        %s233 = sand.u32 %s31, 1
        %s234 = scalar_lea.sflag [#allocation3], %s233
        %s235 = sand.u32 %s31, 1
        %s236 = smul.addr %s235, 64
        %s237 = scalar_lea.vmem [#allocation2], %s236
        // Predicated region
        $region41: #{tpu_custom_call.1} parent=39 // pred_check
          %p238 = pneg %p44
        $region42: #{tpu_custom_call.1} parent=39 // pred_check_branch
          %240 = sbr.rel (%p238) target = $region44
        $region43: #{tpu_custom_call.1} parent=39 // pred_region
          %241 = dma.done %s234, 1024
        $region44: #{tpu_custom_call.1} parent=39 // pred_fallthru
          _
        // Predicated region
        $region45: #{tpu_custom_call.1} parent=39 // pred_check
          %p242 = pneg %p65
        $region46: #{tpu_custom_call.1} parent=39 // pred_check_branch
          %244 = sbr.rel (%p242) target = $region48
        $region47: #{tpu_custom_call.1} parent=39 // pred_region
          %245 = dma.done [#allocation6], 4096
        $region48: #{tpu_custom_call.1} parent=39 // pred_fallthru
          _
        // Predicated region
        $region49: #{tpu_custom_call.1} parent=39 // pred_check
          %p246 = pneg %p107
        $region50: #{tpu_custom_call.1} parent=39 // pred_check_branch
          %248 = sbr.rel (%p246) target = $region52
        $region51: #{tpu_custom_call.1} parent=39 // pred_region
          %249 = dma.done [#allocation6], 4096
        $region52: #{tpu_custom_call.1} parent=39 // pred_fallthru
          _
        %s250 = sand.u32 %s31, 1
        %s251 = scalar_lea.sflag [#allocation3], %s250
        %s252 = sand.u32 %s31, 1
        %s253 = smul.addr %s252, 64
        %s254 = scalar_lea.vmem [#allocation2], %s253
        %p255 = pneg %p44
        %p256 = pneg %p41
        %p257 = pneg %p65
        %p258 = pneg %p62
        %p259 = pneg %p86
        %p260 = pneg %p83
        %p261 = pneg %p107
        %p262 = pneg %p104
        %p263 = pneg %p128
        %p264 = pneg %p125
        %p265 = pneg %p154
        %p266 = pneg %p151
        %s267 = sand.u32 %s141, 1
        %s268 = scalar_lea.sflag [#allocation4], %s267
        %s269 = sand.u32 %s141, 1
        %s270 = smul.addr %s269, 64
        %s271 = scalar_lea.vmem [#allocation8], %s270
        %s272 = smul.u32 8, %s23
        %s273 = smul.u32 8, %s23
        %v274 = vld [vmem:[%s237] sm:$0xff]
        %v275 = vld [vmem:[%s237 + $0x8] sm:$0xff]
        %v276 = vld [vmem:[%s237 + $0x10] sm:$0xff]
        %v277 = vld [vmem:[%s237 + $0x18] sm:$0xff]
        %v278 = vld [vmem:[%s237 + $0x20] sm:$0xff]
        %v279 = vld [vmem:[%s237 + $0x28] sm:$0xff]
        %v280 = vld [vmem:[%s237 + $0x30] sm:$0xff]
        %v281 = vld [vmem:[%s237 + $0x38] sm:$0xff]
        %v282 = vld [vmem:[#allocation5] sm:$0xff]
        %v283 = vld [vmem:[#allocation5 + $0x8] sm:$0xff]
        %v284 = vld [vmem:[#allocation5 + $0x10] sm:$0xff]
        %v285 = vld [vmem:[#allocation5 + $0x18] sm:$0xff]
        %v286 = vld [vmem:[#allocation5 + $0x20] sm:$0xff]
        %v287 = vld [vmem:[#allocation5 + $0x28] sm:$0xff]
        %v288 = vld [vmem:[#allocation5 + $0x30] sm:$0xff]
        %v289 = vld [vmem:[#allocation5 + $0x38] sm:$0xff]
        %v290 = vld [vmem:[#allocation5 + $0x40] sm:$0xff]
        %v291 = vld [vmem:[#allocation5 + $0x48] sm:$0xff]
        %v292 = vld [vmem:[#allocation5 + $0x50] sm:$0xff]
        %v293 = vld [vmem:[#allocation5 + $0x58] sm:$0xff]
        %v294 = vld [vmem:[#allocation5 + $0x60] sm:$0xff]
        %v295 = vld [vmem:[#allocation5 + $0x68] sm:$0xff]
        %v296 = vld [vmem:[#allocation5 + $0x70] sm:$0xff]
        %v297 = vld [vmem:[#allocation5 + $0x78] sm:$0xff]
        %v298 = vld [vmem:[#allocation5 + $0x80] sm:$0xff]
        %v299 = vld [vmem:[#allocation5 + $0x88] sm:$0xff]
        %v300 = vld [vmem:[#allocation5 + $0x90] sm:$0xff]
        %v301 = vld [vmem:[#allocation5 + $0x98] sm:$0xff]
        %v302 = vld [vmem:[#allocation5 + $0xa0] sm:$0xff]
        %v303 = vld [vmem:[#allocation5 + $0xa8] sm:$0xff]
        %v304 = vld [vmem:[#allocation5 + $0xb0] sm:$0xff]
        %v305 = vld [vmem:[#allocation5 + $0xb8] sm:$0xff]
        %v306 = vld [vmem:[#allocation5 + $0xc0] sm:$0xff]
        %v307 = vld [vmem:[#allocation5 + $0xc8] sm:$0xff]
        %v308 = vld [vmem:[#allocation5 + $0xd0] sm:$0xff]
        %v309 = vld [vmem:[#allocation5 + $0xd8] sm:$0xff]
        %v310 = vld [vmem:[#allocation5 + $0xe0] sm:$0xff]
        %v311 = vld [vmem:[#allocation5 + $0xe8] sm:$0xff]
        %v312 = vld [vmem:[#allocation5 + $0xf0] sm:$0xff]
        %v313 = vld [vmem:[#allocation5 + $0xf8] sm:$0xff]
        %v314 = vld [vmem:[%s2] sm:$0x3]
        %v316 = vlaneseq
        %v317 = vshrl.u32 %v316, 7
        %v318 = vsub.s32 0, %v317
        %v319 = vrot.slane %v314, %v318
        %v320 = vlaneseq
        %v321 = vshrl.u32 %v320, 7
        %v322 = vsub.s32 1, %v321
        %v323 = vrot.slane %v314, %v322
        %326 = vmatprep.subr.mxu0 %v283
        %327 = vmatpush1.msra.mxu0 %v282
        %328 = vmatprep.subr.mxu0 %v285
        %329 = vmatpush1.msra.mxu0 %v284
        %330 = vmatprep.subr.mxu0 %v287
        %331 = vmatpush1.msra.mxu0 %v286
        %332 = vmatprep.subr.mxu0 %v289
        %333 = vmatpush1.msra.mxu0 %v288
        %334 = vmatprep.subr.mxu0 %v291
        %335 = vmatpush1.msra.mxu0 %v290
        %336 = vmatprep.subr.mxu0 %v293
        %337 = vmatpush1.msra.mxu0 %v292
        %338 = vmatprep.subr.mxu0 %v295
        %339 = vmatpush1.msra.mxu0 %v294
        %340 = vmatprep.subr.mxu0 %v297
        %341 = vmatpush1.msra.mxu0 %v296
        %342 = vmatprep.subr.mxu0 %v299
        %343 = vmatpush1.msra.mxu0 %v298
        %344 = vmatprep.subr.mxu0 %v301
        %345 = vmatpush1.msra.mxu0 %v300
        %346 = vmatprep.subr.mxu0 %v303
        %347 = vmatpush1.msra.mxu0 %v302
        %348 = vmatprep.subr.mxu0 %v305
        %349 = vmatpush1.msra.mxu0 %v304
        %350 = vmatprep.subr.mxu0 %v307
        %351 = vmatpush1.msra.mxu0 %v306
        %352 = vmatprep.subr.mxu0 %v309
        %353 = vmatpush1.msra.mxu0 %v308
        %354 = vmatprep.subr.mxu0 %v311
        %355 = vmatpush1.msra.mxu0 %v310
        %356 = vmatprep.subr.mxu0 %v313
        %357 = vmatpush1.msra.mxu0 %v312
        %358 = vmatprep.subr.mxu0 0.0
        %359 = vmatpush1.msra.mxu0 0.0
        %360 = vmatprep.subr.mxu0 0.0
        %361 = vmatpush1.msra.mxu0 0.0
        %362 = vmatprep.subr.mxu0 0.0
        %363 = vmatpush1.msra.mxu0 0.0
        %364 = vmatprep.subr.mxu0 0.0
        %365 = vmatpush1.msra.mxu0 0.0
        %366 = vmatprep.subr.mxu0 0.0
        %367 = vmatpush1.msra.mxu0 0.0
        %368 = vmatprep.subr.mxu0 0.0
        %369 = vmatpush1.msra.mxu0 0.0
        %370 = vmatprep.subr.mxu0 0.0
        %371 = vmatpush1.msra.mxu0 0.0
        %372 = vmatprep.subr.mxu0 0.0
        %373 = vmatpush1.msra.mxu0 0.0
        %374 = vmatprep.subr.mxu0 0.0
        %375 = vmatpush1.msra.mxu0 0.0
        %376 = vmatprep.subr.mxu0 0.0
        %377 = vmatpush1.msra.mxu0 0.0
        %378 = vmatprep.subr.mxu0 0.0
        %379 = vmatpush1.msra.mxu0 0.0
        %380 = vmatprep.subr.mxu0 0.0
        %381 = vmatpush1.msra.mxu0 0.0
        %382 = vmatprep.subr.mxu0 0.0
        %383 = vmatpush1.msra.mxu0 0.0
        %384 = vmatprep.subr.mxu0 0.0
        %385 = vmatpush1.msra.mxu0 0.0
        %386 = vmatprep.subr.mxu0 0.0
        %387 = vmatpush1.msra.mxu0 0.0
        %388 = vmatprep.subr.mxu0 0.0
        %389 = vmatpush1.msra.mxu0 0.0
        %390 = vmatprep.mubr.f32.mxu0 0.0
        %391 = vmatmul.mubr.f32.gmra.mrb[0].mxu0 %v274
        %v392 = vpop.f32.mrb[0].mxu0
        %v393 = vadd.f32 %v319, %v392
        %v394 = vpop.f32.mrb[0].mxu0
        %v395 = vadd.f32 %v323, %v394
        %396 = vmatprep.mubr.f32.mxu0 0.0
        %397 = vmatmul.mubr.f32.gmra.mrb[0].mxu0 %v275
        %v398 = vpop.f32.mrb[0].mxu0
        %v399 = vadd.f32 %v319, %v398
        %v400 = vpop.f32.mrb[0].mxu0
        %v401 = vadd.f32 %v323, %v400
        %402 = vmatprep.mubr.f32.mxu0 0.0
        %403 = vmatmul.mubr.f32.gmra.mrb[0].mxu0 %v276
        %v404 = vpop.f32.mrb[0].mxu0
        %v405 = vadd.f32 %v319, %v404
        %v406 = vpop.f32.mrb[0].mxu0
        %v407 = vadd.f32 %v323, %v406
        %408 = vmatprep.mubr.f32.mxu0 0.0
        %409 = vmatmul.mubr.f32.gmra.mrb[0].mxu0 %v277
        %v410 = vpop.f32.mrb[0].mxu0
        %v411 = vadd.f32 %v319, %v410
        %v412 = vpop.f32.mrb[0].mxu0
        %v413 = vadd.f32 %v323, %v412
        %414 = vmatprep.mubr.f32.mxu0 0.0
        %415 = vmatmul.mubr.f32.gmra.mrb[0].mxu0 %v278
        %v416 = vpop.f32.mrb[0].mxu0
        %v417 = vadd.f32 %v319, %v416
        %v418 = vpop.f32.mrb[0].mxu0
        %v419 = vadd.f32 %v323, %v418
        %420 = vmatprep.mubr.f32.mxu0 0.0
        %421 = vmatmul.mubr.f32.gmra.mrb[0].mxu0 %v279
        %v422 = vpop.f32.mrb[0].mxu0
        %v423 = vadd.f32 %v319, %v422
        %v424 = vpop.f32.mrb[0].mxu0
        %v425 = vadd.f32 %v323, %v424
        %426 = vmatprep.mubr.f32.mxu0 0.0
        %427 = vmatmul.mubr.f32.gmra.mrb[0].mxu0 %v280
        %v428 = vpop.f32.mrb[0].mxu0
        %v429 = vadd.f32 %v319, %v428
        %v430 = vpop.f32.mrb[0].mxu0
        %v431 = vadd.f32 %v323, %v430
        %432 = vmatprep.mubr.f32.mxu0 0.0
        %433 = vmatmul.mubr.f32.gmra.mrb[0].mxu0 %v281
        %v434 = vpop.f32.mrb[0].mxu0
        %v435 = vadd.f32 %v319, %v434
        %v436 = vpop.f32.mrb[0].mxu0
        %v437 = vadd.f32 %v323, %v436
        %438 = vdwg.mxu0
        %v439 = vmul.f32 %v393, 0.5
        %v440 = vmul.f32 %v395, 0.5
        %v441 = vmul.f32 %v399, 0.5
        %v442 = vmul.f32 %v401, 0.5
        %v443 = vmul.f32 %v405, 0.5
        %v444 = vmul.f32 %v407, 0.5
        %v445 = vmul.f32 %v411, 0.5
        %v446 = vmul.f32 %v413, 0.5
        %v447 = vmul.f32 %v417, 0.5
        %v448 = vmul.f32 %v419, 0.5
        %v449 = vmul.f32 %v423, 0.5
        %v450 = vmul.f32 %v425, 0.5
        %v451 = vmul.f32 %v429, 0.5
        %v452 = vmul.f32 %v431, 0.5
        %v453 = vmul.f32 %v435, 0.5
        %v454 = vmul.f32 %v437, 0.5
        %v455 = vmul.f32 %v393, 0.70710677
        %v456 = vmul.f32 %v395, 0.70710677
        %v457 = vmul.f32 %v399, 0.70710677
        %v458 = vmul.f32 %v401, 0.70710677
        %v459 = vmul.f32 %v405, 0.70710677
        %v460 = vmul.f32 %v407, 0.70710677
        %v461 = vmul.f32 %v411, 0.70710677
        %v462 = vmul.f32 %v413, 0.70710677
        %v463 = vmul.f32 %v417, 0.70710677
        %v464 = vmul.f32 %v419, 0.70710677
        %v465 = vmul.f32 %v423, 0.70710677
        %v466 = vmul.f32 %v425, 0.70710677
        %v467 = vmul.f32 %v429, 0.70710677
        %v468 = vmul.f32 %v431, 0.70710677
        %v469 = vmul.f32 %v435, 0.70710677
        %v470 = vmul.f32 %v437, 0.70710677
        %v471 = verf.f32.pop %v455
        %v472 = verf.f32.pop %v456
        %v473 = verf.f32.pop %v457
        %v474 = verf.f32.pop %v458
        %v475 = verf.f32.pop %v459
        %v476 = verf.f32.pop %v460
        %v477 = verf.f32.pop %v461
        %v478 = verf.f32.pop %v462
        %v479 = verf.f32.pop %v463
        %v480 = verf.f32.pop %v464
        %v481 = verf.f32.pop %v465
        %v482 = verf.f32.pop %v466
        %v483 = verf.f32.pop %v467
        %v484 = verf.f32.pop %v468
        %v485 = verf.f32.pop %v469
        %v486 = verf.f32.pop %v470
        %v487 = vadd.f32 %v471, 1.0
        %v488 = vadd.f32 %v472, 1.0
        %v489 = vadd.f32 %v473, 1.0
        %v490 = vadd.f32 %v474, 1.0
        %v491 = vadd.f32 %v475, 1.0
        %v492 = vadd.f32 %v476, 1.0
        %v493 = vadd.f32 %v477, 1.0
        %v494 = vadd.f32 %v478, 1.0
        %v495 = vadd.f32 %v479, 1.0
        %v496 = vadd.f32 %v480, 1.0
        %v497 = vadd.f32 %v481, 1.0
        %v498 = vadd.f32 %v482, 1.0
        %v499 = vadd.f32 %v483, 1.0
        %v500 = vadd.f32 %v484, 1.0
        %v501 = vadd.f32 %v485, 1.0
        %v502 = vadd.f32 %v486, 1.0
        %v503 = vmul.f32 %v439, %v487
        %v504 = vmul.f32 %v440, %v488
        %v505 = vmul.f32 %v441, %v489
        %v506 = vmul.f32 %v442, %v490
        %v507 = vmul.f32 %v443, %v491
        %v508 = vmul.f32 %v444, %v492
        %v509 = vmul.f32 %v445, %v493
        %v510 = vmul.f32 %v446, %v494
        %v511 = vmul.f32 %v447, %v495
        %v512 = vmul.f32 %v448, %v496
        %v513 = vmul.f32 %v449, %v497
        %v514 = vmul.f32 %v450, %v498
        %v515 = vmul.f32 %v451, %v499
        %v516 = vmul.f32 %v452, %v500
        %v517 = vmul.f32 %v453, %v501
        %v518 = vmul.f32 %v454, %v502
        %v519 = vld [vmem:[#allocation7] sm:$0xff]
        %v520 = vld [vmem:[#allocation7 + $0x8] sm:$0xff]
        %v521 = vld [vmem:[#allocation7 + $0x10] sm:$0xff]
        %v522 = vld [vmem:[#allocation7 + $0x18] sm:$0xff]
        %v523 = vld [vmem:[#allocation7 + $0x20] sm:$0xff]
        %v524 = vld [vmem:[#allocation7 + $0x28] sm:$0xff]
        %v525 = vld [vmem:[#allocation7 + $0x30] sm:$0xff]
        %v526 = vld [vmem:[#allocation7 + $0x38] sm:$0xff]
        %v527 = vld [vmem:[#allocation7 + $0x40] sm:$0xff]
        %v528 = vld [vmem:[#allocation7 + $0x48] sm:$0xff]
        %v529 = vld [vmem:[#allocation7 + $0x50] sm:$0xff]
        %v530 = vld [vmem:[#allocation7 + $0x58] sm:$0xff]
        %v531 = vld [vmem:[#allocation7 + $0x60] sm:$0xff]
        %v532 = vld [vmem:[#allocation7 + $0x68] sm:$0xff]
        %v533 = vld [vmem:[#allocation7 + $0x70] sm:$0xff]
        %v534 = vld [vmem:[#allocation7 + $0x78] sm:$0xff]
        %v535 = vld [vmem:[#allocation7 + $0x80] sm:$0xff]
        %v536 = vld [vmem:[#allocation7 + $0x88] sm:$0xff]
        %v537 = vld [vmem:[#allocation7 + $0x90] sm:$0xff]
        %v538 = vld [vmem:[#allocation7 + $0x98] sm:$0xff]
        %v539 = vld [vmem:[#allocation7 + $0xa0] sm:$0xff]
        %v540 = vld [vmem:[#allocation7 + $0xa8] sm:$0xff]
        %v541 = vld [vmem:[#allocation7 + $0xb0] sm:$0xff]
        %v542 = vld [vmem:[#allocation7 + $0xb8] sm:$0xff]
        %v543 = vld [vmem:[#allocation7 + $0xc0] sm:$0xff]
        %v544 = vld [vmem:[#allocation7 + $0xc8] sm:$0xff]
        %v545 = vld [vmem:[#allocation7 + $0xd0] sm:$0xff]
        %v546 = vld [vmem:[#allocation7 + $0xd8] sm:$0xff]
        %v547 = vld [vmem:[#allocation7 + $0xe0] sm:$0xff]
        %v548 = vld [vmem:[#allocation7 + $0xe8] sm:$0xff]
        %v549 = vld [vmem:[#allocation7 + $0xf0] sm:$0xff]
        %v550 = vld [vmem:[#allocation7 + $0xf8] sm:$0xff]
        %v551 = vld [vmem:[%s4] sm:$0x1]
        %v553 = vlaneseq
        %v554 = vshrl.u32 %v553, 7
        %v555 = vsub.s32 0, %v554
        %v556 = vrot.slane %v551, %v555
        %558 = vmatprep.subr.mxu0 0.0
        %559 = vmatpush1.msra.mxu0 %v519
        %560 = vmatprep.subr.mxu0 0.0
        %561 = vmatpush1.msra.mxu0 %v520
        %562 = vmatprep.subr.mxu0 0.0
        %563 = vmatpush1.msra.mxu0 %v521
        %564 = vmatprep.subr.mxu0 0.0
        %565 = vmatpush1.msra.mxu0 %v522
        %566 = vmatprep.subr.mxu0 0.0
        %567 = vmatpush1.msra.mxu0 %v523
        %568 = vmatprep.subr.mxu0 0.0
        %569 = vmatpush1.msra.mxu0 %v524
        %570 = vmatprep.subr.mxu0 0.0
        %571 = vmatpush1.msra.mxu0 %v525
        %572 = vmatprep.subr.mxu0 0.0
        %573 = vmatpush1.msra.mxu0 %v526
        %574 = vmatprep.subr.mxu0 0.0
        %575 = vmatpush1.msra.mxu0 %v527
        %576 = vmatprep.subr.mxu0 0.0
        %577 = vmatpush1.msra.mxu0 %v528
        %578 = vmatprep.subr.mxu0 0.0
        %579 = vmatpush1.msra.mxu0 %v529
        %580 = vmatprep.subr.mxu0 0.0
        %581 = vmatpush1.msra.mxu0 %v530
        %582 = vmatprep.subr.mxu0 0.0
        %583 = vmatpush1.msra.mxu0 %v531
        %584 = vmatprep.subr.mxu0 0.0
        %585 = vmatpush1.msra.mxu0 %v532
        %586 = vmatprep.subr.mxu0 0.0
        %587 = vmatpush1.msra.mxu0 %v533
        %588 = vmatprep.subr.mxu0 0.0
        %589 = vmatpush1.msra.mxu0 %v534
        %590 = vmatprep.subr.mxu0 0.0
        %591 = vmatpush1.msra.mxu0 %v535
        %592 = vmatprep.subr.mxu0 0.0
        %593 = vmatpush1.msra.mxu0 %v536
        %594 = vmatprep.subr.mxu0 0.0
        %595 = vmatpush1.msra.mxu0 %v537
        %596 = vmatprep.subr.mxu0 0.0
        %597 = vmatpush1.msra.mxu0 %v538
        %598 = vmatprep.subr.mxu0 0.0
        %599 = vmatpush1.msra.mxu0 %v539
        %600 = vmatprep.subr.mxu0 0.0
        %601 = vmatpush1.msra.mxu0 %v540
        %602 = vmatprep.subr.mxu0 0.0
        %603 = vmatpush1.msra.mxu0 %v541
        %604 = vmatprep.subr.mxu0 0.0
        %605 = vmatpush1.msra.mxu0 %v542
        %606 = vmatprep.subr.mxu0 0.0
        %607 = vmatpush1.msra.mxu0 %v543
        %608 = vmatprep.subr.mxu0 0.0
        %609 = vmatpush1.msra.mxu0 %v544
        %610 = vmatprep.subr.mxu0 0.0
        %611 = vmatpush1.msra.mxu0 %v545
        %612 = vmatprep.subr.mxu0 0.0
        %613 = vmatpush1.msra.mxu0 %v546
        %614 = vmatprep.subr.mxu0 0.0
        %615 = vmatpush1.msra.mxu0 %v547
        %616 = vmatprep.subr.mxu0 0.0
        %617 = vmatpush1.msra.mxu0 %v548
        %618 = vmatprep.subr.mxu0 0.0
        %619 = vmatpush1.msra.mxu0 %v549
        %620 = vmatprep.subr.mxu0 0.0
        %621 = vmatpush1.msra.mxu0 %v550
        %622 = vmatprep.mubr.f32.mxu0 %v504
        %623 = vmatmul.mubr.f32.gmra.mrb[0].mxu0 %v503
        %v624 = vpop.f32.mrb[0].mxu0
        %v625 = vadd.f32 %v556, %v624
        %v626 = vpop.f32.mrb[0].mxu0
        %627 = vmatprep.mubr.f32.mxu0 %v506
        %628 = vmatmul.mubr.f32.gmra.mrb[0].mxu0 %v505
        %v629 = vpop.f32.mrb[0].mxu0
        %v630 = vadd.f32 %v556, %v629
        %v631 = vpop.f32.mrb[0].mxu0
        %632 = vmatprep.mubr.f32.mxu0 %v508
        %633 = vmatmul.mubr.f32.gmra.mrb[0].mxu0 %v507
        %v634 = vpop.f32.mrb[0].mxu0
        %v635 = vadd.f32 %v556, %v634
        %v636 = vpop.f32.mrb[0].mxu0
        %637 = vmatprep.mubr.f32.mxu0 %v510
        %638 = vmatmul.mubr.f32.gmra.mrb[0].mxu0 %v509
        %v639 = vpop.f32.mrb[0].mxu0
        %v640 = vadd.f32 %v556, %v639
        %v641 = vpop.f32.mrb[0].mxu0
        %642 = vmatprep.mubr.f32.mxu0 %v512
        %643 = vmatmul.mubr.f32.gmra.mrb[0].mxu0 %v511
        %v644 = vpop.f32.mrb[0].mxu0
        %v645 = vadd.f32 %v556, %v644
        %v646 = vpop.f32.mrb[0].mxu0
        %647 = vmatprep.mubr.f32.mxu0 %v514
        %648 = vmatmul.mubr.f32.gmra.mrb[0].mxu0 %v513
        %v649 = vpop.f32.mrb[0].mxu0
        %v650 = vadd.f32 %v556, %v649
        %v651 = vpop.f32.mrb[0].mxu0
        %652 = vmatprep.mubr.f32.mxu0 %v516
        %653 = vmatmul.mubr.f32.gmra.mrb[0].mxu0 %v515
        %v654 = vpop.f32.mrb[0].mxu0
        %v655 = vadd.f32 %v556, %v654
        %v656 = vpop.f32.mrb[0].mxu0
        %657 = vmatprep.mubr.f32.mxu0 %v518
        %658 = vmatmul.mubr.f32.gmra.mrb[0].mxu0 %v517
        %v659 = vpop.f32.mrb[0].mxu0
        %v660 = vadd.f32 %v556, %v659
        %v661 = vpop.f32.mrb[0].mxu0
        %662 = vdwg.mxu0
        %663 = vst [vmem:[%s271] sm:$0xff] %v625
        %664 = vst [vmem:[%s271 + $0x8] sm:$0xff] %v630
        %665 = vst [vmem:[%s271 + $0x10] sm:$0xff] %v635
        %666 = vst [vmem:[%s271 + $0x18] sm:$0xff] %v640
        %667 = vst [vmem:[%s271 + $0x20] sm:$0xff] %v645
        %668 = vst [vmem:[%s271 + $0x28] sm:$0xff] %v650
        %669 = vst [vmem:[%s271 + $0x30] sm:$0xff] %v655
        %670 = vst [vmem:[%s271 + $0x38] sm:$0xff] %v660
        %s671 = sand.u32 %s141, 1
        %s672 = scalar_lea.sflag [#allocation4], %s671
        %s673 = sand.u32 %s141, 1
        %s674 = smul.addr %s673, 64
        %s675 = scalar_lea.vmem [#allocation8], %s674
        // Predicated region
        $region53: #{tpu_custom_call.1} parent=39 // pred_check
          %p676 = pneg %p151
        $region54: #{tpu_custom_call.1} parent=39 // pred_check_branch
          %678 = sbr.rel (%p676) target = $region56
        $region55: #{tpu_custom_call.1} parent=39 // pred_region
          %s679 = smul.u32 8, %s23
          %s681 = ssub.s32 1024, 1024
          %682 = vsyncadd %s672, %s681
          %s683 = smul.addr %s679, 128
          %s684 = scalar_lea.hbm %s5, %s683
          %s685 = sshll.u32 %s675, 4
          %s686 = int_to_ptr.vmem [resolvable:$true] %s685
          %691 = dma.vmem_to_hbm [thread:$0]  %s686, 1024, %s684, %s672, 128, 128, 8
        $region56: #{tpu_custom_call.1} parent=39 // pred_fallthru
          _
      $region40: #{tpu_custom_call.1} parent=5 // pred_fallthru
        _
      %p692 = scmp.le.s32.totalorder 2, %s18
      // Predicated region
      $region57: #{tpu_custom_call.1} parent=5 // pred_check
        %p693 = pneg %p692
      $region58: #{tpu_custom_call.1} parent=5 // pred_check_branch
        %695 = sbr.rel (%p693) target = $region60
      $region59: #{tpu_custom_call.1} parent=5 // pred_region
        %s696 = ssub.s32 %s18, 2
        // Predicated region
        $region61: #{tpu_custom_call.1} parent=59 // pred_check
          %p697 = pneg %p157
        $region62: #{tpu_custom_call.1} parent=59 // pred_check_branch
          %699 = sbr.rel (%p697) target = $region64
        $region63: #{tpu_custom_call.1} parent=59 // pred_region
          %s700 = sand.u32 %s142, 1
          %s701 = scalar_lea.sflag [#allocation4], %s700
          %s702 = sand.u32 %s142, 1
          %s703 = smul.addr %s702, 64
          %s704 = scalar_lea.vmem [#allocation8], %s703
          %705 = dma.done %s701, 1024
        $region64: #{tpu_custom_call.1} parent=59 // pred_fallthru
          _
      $region60: #{tpu_custom_call.1} parent=5 // pred_fallthru
        _
    $region6: #{tpu_custom_call.1} parent=1 // loop_footer
      %s22 = sadd.s32 1, %s18
    $region7: #{tpu_custom_call.1} parent=1 // loop_footer_branch
      %17 = sbr.rel target = $region3
    $region8: #{tpu_custom_call.1} parent=1 // loop_exit
      _
    %706 = vsyncpa [#allocation3], 1
    %s707 = scalar_lea.sflag [#allocation3], 1
    %708 = vsyncpa %s707, 1
    %709 = vsyncpa [#allocation6], 1
    %710 = vsyncpa [#allocation4], 1
    %s711 = scalar_lea.sflag [#allocation4], 1
    %712 = vsyncpa %s711, 1

</llo_original>
